<compile_context>
chip_gen: v5e
topology: v5e:2x2
jax: 0.10.0
libtpu: 0.0.40
codegen_flags: <defaults>
</compile_context>

<pallas_src>
import functools

import jax
import jax.numpy as jnp
from jax.experimental import pallas as pl
from jax.experimental.pallas import tpu as pltpu


def _round_up(x, m):
    return ((x + m - 1) // m) * m


def _partial_conv_kernel(x_ref, w_ref, b_ref, o_ref, xp_ref, rhs_ref, *,
                         H, W, Hp, Wp, KH, KW, ph, pw, Lw):
    """One batch element per grid step.

    x_ref:   (1, Cin, H*W)        flattened NCHW input (lane-dense)
    w_ref:   (Cout, KH*KW*Cin)    weight, K ordered (kh, kw, c)
    b_ref:   (Cout, 1)            bias
    o_ref:   (1, Cout, Lw)        lane-dense wide stride-1 correlation output
    xp_ref:  (Cin, Lw)            scratch: zero-padded flattened (Hp*Wp) frame
    rhs_ref: (KH*KW*Cin, Lw)      scratch: im2col rhs (one shifted frame per tap)
    """
    Cin = xp_ref.shape[0]

    # Fold the zero-pad into the kernel: zero the padded frame once, then
    # scatter the H interior rows (x is read from HBM exactly once).
    xp_ref[...] = jnp.zeros_like(xp_ref)
    x = x_ref[0]                                      # (Cin, H*W), lane-dense load
    for h in range(H):
        dst = (h + ph) * Wp + pw
        xp_ref[:, pl.ds(dst, W)] = x[:, h * W:(h + 1) * W]

    # im2col: for tap (kh, kw) the contribution at flat output column i reads
    # xp[:, i + kh*Wp + kw]  ->  one static lane-rotation per tap, stacked on
    # the sublane axis of the rhs scratch.
    xp = xp_ref[...]                                  # (Cin, Lw)
    for kh in range(KH):
        for kw in range(KW):
            s = kh * Wp + kw
            tap = kh * KW + kw
            src = xp if s == 0 else pltpu.roll(xp, shift=Lw - s, axis=1)
            rhs_ref[pl.ds(tap * Cin, Cin), :] = src

    # Single MXU matmul over K = KH*KW*Cin with lane-dense N = Lw, plus bias.
    acc = jnp.dot(w_ref[...], rhs_ref[...], preferred_element_type=jnp.float32)
    acc = acc + b_ref[...]                            # (Cout, 1) broadcast over lanes
    o_ref[0] = acc.astype(o_ref.dtype)                # unmasked lane-dense store


def partial_conv2d(x_nchw, weight_oihw, bias, *, stride=(1, 1), padding=(1, 1)):
    """Conv2d forward with pre-sliced weight/bias (== PartialConv2d.forward).

    x_nchw:      (N, Cin, H, W)       float32
    weight_oihw: (Cout, Cin, KH, KW)  float32 (already sliced [begin:end))
    bias:        (Cout,)              float32 (already sliced)
    returns:     (N, Cout, OH, OW)    float32 (PyTorch NCHW convention)
    """
    N, Cin, H, W = x_nchw.shape
    Cout, _, KH, KW = weight_oihw.shape
    sh, sw = stride
    ph, pw = padding
    Hp, Wp = H + 2 * ph, W + 2 * pw
    OH = (Hp - KH) // sh + 1
    OW = (Wp - KW) // sw + 1
    Hc, Wc = Hp - KH + 1, Wp - KW + 1                # stride-1 correlation extent
    Lw = max(_round_up(Hp * Wp, 128), 128)           # lane-dense wide-output width

    # Layout glue (all tiny / copy-free): stay in NCHW; flatten spatial dims;
    # reorder the small weight tensor to match the kernel's rhs row order.
    x_flat = x_nchw.reshape(N, Cin, H * W)
    w2 = jnp.transpose(weight_oihw, (0, 2, 3, 1)).reshape(Cout, KH * KW * Cin)
    b2 = bias.reshape(Cout, 1)

    kernel = functools.partial(_partial_conv_kernel, H=H, W=W, Hp=Hp, Wp=Wp,
                               KH=KH, KW=KW, ph=ph, pw=pw, Lw=Lw)

    flops = 2 * N * Hc * Wc * Cout * Cin * KH * KW
    bytes_accessed = int(x_flat.size + w2.size + b2.size + N * Cout * Lw) * 4

    out_wide = pl.pallas_call(
        kernel,
        out_shape=jax.ShapeDtypeStruct((N, Cout, Lw), x_nchw.dtype),
        grid=(N,),
        in_specs=[
            pl.BlockSpec((1, Cin, H * W), lambda n: (n, 0, 0)),
            pl.BlockSpec((Cout, KH * KW * Cin), lambda n: (0, 0)),
            pl.BlockSpec((Cout, 1), lambda n: (0, 0)),
        ],
        out_specs=pl.BlockSpec((1, Cout, Lw), lambda n: (n, 0, 0)),
        scratch_shapes=[
            pltpu.VMEM((Cin, Lw), jnp.float32),
            pltpu.VMEM((KH * KW * Cin, Lw), jnp.float32),
        ],
        compiler_params=pltpu.CompilerParams(
            dimension_semantics=("parallel",)),     # size-2 parallel axis -> both v7x TCs
        cost_estimate=pl.CostEstimate(flops=flops, transcendentals=0,
                                      bytes_accessed=bytes_accessed),
    )(x_flat, w2, b2)

    # Extract the valid (strided) conv outputs from the wide stride-1 slab:
    # column r*Wp + c of the slab is the stride-1 correlation at (r, c).
    conv_s1 = out_wide[:, :, :Hc * Wp].reshape(N, Cout, Hc, Wp)[:, :, :, :Wc]
    return conv_s1[:, :, ::sh, ::sw][:, :, :OH, :OW]


if __name__ == "__main__":
    # Original conv: in_channels=4, out_channels=8, kernel 3x3, stride 1, padding 1, bias.
    # PartialConv2d slices output channels [2, 6)  ->  4 output channels.
    key = jax.random.PRNGKey(0)
    k_x, k_w, k_b = jax.random.split(key, 3)

    N, Cin, H, W = 2, 4, 16, 16
    full_out, KH, KW = 8, 3, 3
    begin, end = 2, 6

    x = jax.random.normal(k_x, (N, Cin, H, W), dtype=jnp.float32)
    full_weight = jax.random.normal(k_w, (full_out, Cin, KH, KW), dtype=jnp.float32) * 0.1
    full_bias = jax.random.normal(k_b, (full_out,), dtype=jnp.float32) * 0.1

    # PartialConv2d.__init__: slice weight/bias to the [begin, end) output-channel range.
    w_part = full_weight[begin:end]
    b_part = full_bias[begin:end]

    out = partial_conv2d(x, w_part, b_part, stride=(1, 1), padding=(1, 1))
    out = jax.block_until_ready(out)

    # Plain-JAX reference (NCHW conv) to validate semantics.
    ref = jax.lax.conv_general_dilated(
        x, w_part, window_strides=(1, 1), padding=((1, 1), (1, 1)),
        dimension_numbers=("NCHW", "OIHW", "NCHW"),
    ) + b_part.reshape(1, -1, 1, 1)

    assert out.shape == (N, end - begin, H, W), out.shape
    assert jnp.allclose(out, ref, atol=1e-4, rtol=1e-4), float(jnp.max(jnp.abs(out - ref)))

    print("KERNEL_OK")
</pallas_src>

<mosaic_0001>
module attributes {stable_mosaic.version = 11 : i64} {
  func.func @_partial_conv_kernel(%arg0: i32, %arg1: memref<1x4x256xf32, #tpu.memory_space<vmem>>, %arg2: memref<4x36xf32, #tpu.memory_space<vmem>>, %arg3: memref<4x1xf32, #tpu.memory_space<vmem>>, %arg4: memref<1x4x384xf32, #tpu.memory_space<vmem>>, %arg5: memref<4x384xf32, #tpu.memory_space<vmem>>, %arg6: memref<36x384xf32, #tpu.memory_space<vmem>>) attributes {dimension_semantics = [#tpu.dimension_semantics<parallel>], iteration_bounds = array<i64: 2>, scalar_prefetch = 0 : i64, scratch_operands = 2 : i64, tpu.core_type = #tpu.core_type<tc>, window_params = [{transform_indices = @transform_0, window_bounds = array<i64: 1, 4, 256>}, {pipeline_mode = #tpu.pipeline_mode<synchronous>, transform_indices = @transform_1, window_bounds = array<i64: 4, 36>}, {pipeline_mode = #tpu.pipeline_mode<synchronous>, transform_indices = @transform_2, window_bounds = array<i64: 4, 1>}, {transform_indices = @transform_3, window_bounds = array<i64: 1, 4, 384>}]} {
    %cst = arith.constant 0.000000e+00 : f32
    %0 = vector.broadcast %cst : f32 to vector<4x384xf32>
    %c0 = arith.constant 0 : index
    %c0_0 = arith.constant 0 : index
    %1 = vector.load %arg5[%c0, %c0_0] : memref<4x384xf32, #tpu.memory_space<vmem>>, vector<4x384xf32>
    tpu.vector_store %arg5[%c0, %c0_0], %0 {strides = array<i32>} : memref<4x384xf32, #tpu.memory_space<vmem>>, vector<4x384xf32>,
    %c0_1 = arith.constant 0 : index
    %c0_2 = arith.constant 0 : index
    %c0_3 = arith.constant 0 : index
    %2 = vector.load %arg1[%c0_1, %c0_2, %c0_3] : memref<1x4x256xf32, #tpu.memory_space<vmem>>, vector<1x4x256xf32>
    %3 = vector.shape_cast %2 : vector<1x4x256xf32> to vector<4x256xf32>
    %4 = vector.extract_strided_slice %3 {offsets = [0, 0], sizes = [4, 16], strides = [1, 1]} : vector<4x256xf32> to vector<4x16xf32>
    %c0_4 = arith.constant 0 : index
    %c19 = arith.constant 19 : index
    %5 = vector.load %arg5[%c0_4, %c19] : memref<4x384xf32, #tpu.memory_space<vmem>>, vector<4x16xf32>
    tpu.vector_store %arg5[%c0_4, %c19], %4 {strides = array<i32>} : memref<4x384xf32, #tpu.memory_space<vmem>>, vector<4x16xf32>,
    %6 = vector.extract_strided_slice %3 {offsets = [0, 16], sizes = [4, 16], strides = [1, 1]} : vector<4x256xf32> to vector<4x16xf32>
    %c0_5 = arith.constant 0 : index
    %c37 = arith.constant 37 : index
    %7 = vector.load %arg5[%c0_5, %c37] : memref<4x384xf32, #tpu.memory_space<vmem>>, vector<4x16xf32>
    tpu.vector_store %arg5[%c0_5, %c37], %6 {strides = array<i32>} : memref<4x384xf32, #tpu.memory_space<vmem>>, vector<4x16xf32>,
    %8 = vector.extract_strided_slice %3 {offsets = [0, 32], sizes = [4, 16], strides = [1, 1]} : vector<4x256xf32> to vector<4x16xf32>
    %c0_6 = arith.constant 0 : index
    %c55 = arith.constant 55 : index
    %9 = vector.load %arg5[%c0_6, %c55] : memref<4x384xf32, #tpu.memory_space<vmem>>, vector<4x16xf32>
    tpu.vector_store %arg5[%c0_6, %c55], %8 {strides = array<i32>} : memref<4x384xf32, #tpu.memory_space<vmem>>, vector<4x16xf32>,
    %10 = vector.extract_strided_slice %3 {offsets = [0, 48], sizes = [4, 16], strides = [1, 1]} : vector<4x256xf32> to vector<4x16xf32>
    %c0_7 = arith.constant 0 : index
    %c73 = arith.constant 73 : index
    %11 = vector.load %arg5[%c0_7, %c73] : memref<4x384xf32, #tpu.memory_space<vmem>>, vector<4x16xf32>
    tpu.vector_store %arg5[%c0_7, %c73], %10 {strides = array<i32>} : memref<4x384xf32, #tpu.memory_space<vmem>>, vector<4x16xf32>,
    %12 = vector.extract_strided_slice %3 {offsets = [0, 64], sizes = [4, 16], strides = [1, 1]} : vector<4x256xf32> to vector<4x16xf32>
    %c0_8 = arith.constant 0 : index
    %c91 = arith.constant 91 : index
    %13 = vector.load %arg5[%c0_8, %c91] : memref<4x384xf32, #tpu.memory_space<vmem>>, vector<4x16xf32>
    tpu.vector_store %arg5[%c0_8, %c91], %12 {strides = array<i32>} : memref<4x384xf32, #tpu.memory_space<vmem>>, vector<4x16xf32>,
    %14 = vector.extract_strided_slice %3 {offsets = [0, 80], sizes = [4, 16], strides = [1, 1]} : vector<4x256xf32> to vector<4x16xf32>
    %c0_9 = arith.constant 0 : index
    %c109 = arith.constant 109 : index
    %15 = vector.load %arg5[%c0_9, %c109] : memref<4x384xf32, #tpu.memory_space<vmem>>, vector<4x16xf32>
    tpu.vector_store %arg5[%c0_9, %c109], %14 {strides = array<i32>} : memref<4x384xf32, #tpu.memory_space<vmem>>, vector<4x16xf32>,
    %16 = vector.extract_strided_slice %3 {offsets = [0, 96], sizes = [4, 16], strides = [1, 1]} : vector<4x256xf32> to vector<4x16xf32>
    %c0_10 = arith.constant 0 : index
    %c127 = arith.constant 127 : index
    %17 = vector.load %arg5[%c0_10, %c127] : memref<4x384xf32, #tpu.memory_space<vmem>>, vector<4x16xf32>
    tpu.vector_store %arg5[%c0_10, %c127], %16 {strides = array<i32>} : memref<4x384xf32, #tpu.memory_space<vmem>>, vector<4x16xf32>,
    %18 = vector.extract_strided_slice %3 {offsets = [0, 112], sizes = [4, 16], strides = [1, 1]} : vector<4x256xf32> to vector<4x16xf32>
    %c0_11 = arith.constant 0 : index
    %c145 = arith.constant 145 : index
    %19 = vector.load %arg5[%c0_11, %c145] : memref<4x384xf32, #tpu.memory_space<vmem>>, vector<4x16xf32>
    tpu.vector_store %arg5[%c0_11, %c145], %18 {strides = array<i32>} : memref<4x384xf32, #tpu.memory_space<vmem>>, vector<4x16xf32>,
    %20 = vector.extract_strided_slice %3 {offsets = [0, 128], sizes = [4, 16], strides = [1, 1]} : vector<4x256xf32> to vector<4x16xf32>
    %c0_12 = arith.constant 0 : index
    %c163 = arith.constant 163 : index
    %21 = vector.load %arg5[%c0_12, %c163] : memref<4x384xf32, #tpu.memory_space<vmem>>, vector<4x16xf32>
    tpu.vector_store %arg5[%c0_12, %c163], %20 {strides = array<i32>} : memref<4x384xf32, #tpu.memory_space<vmem>>, vector<4x16xf32>,
    %22 = vector.extract_strided_slice %3 {offsets = [0, 144], sizes = [4, 16], strides = [1, 1]} : vector<4x256xf32> to vector<4x16xf32>
    %c0_13 = arith.constant 0 : index
    %c181 = arith.constant 181 : index
    %23 = vector.load %arg5[%c0_13, %c181] : memref<4x384xf32, #tpu.memory_space<vmem>>, vector<4x16xf32>
    tpu.vector_store %arg5[%c0_13, %c181], %22 {strides = array<i32>} : memref<4x384xf32, #tpu.memory_space<vmem>>, vector<4x16xf32>,
    %24 = vector.extract_strided_slice %3 {offsets = [0, 160], sizes = [4, 16], strides = [1, 1]} : vector<4x256xf32> to vector<4x16xf32>
    %c0_14 = arith.constant 0 : index
    %c199 = arith.constant 199 : index
    %25 = vector.load %arg5[%c0_14, %c199] : memref<4x384xf32, #tpu.memory_space<vmem>>, vector<4x16xf32>
    tpu.vector_store %arg5[%c0_14, %c199], %24 {strides = array<i32>} : memref<4x384xf32, #tpu.memory_space<vmem>>, vector<4x16xf32>,
    %26 = vector.extract_strided_slice %3 {offsets = [0, 176], sizes = [4, 16], strides = [1, 1]} : vector<4x256xf32> to vector<4x16xf32>
    %c0_15 = arith.constant 0 : index
    %c217 = arith.constant 217 : index
    %27 = vector.load %arg5[%c0_15, %c217] : memref<4x384xf32, #tpu.memory_space<vmem>>, vector<4x16xf32>
    tpu.vector_store %arg5[%c0_15, %c217], %26 {strides = array<i32>} : memref<4x384xf32, #tpu.memory_space<vmem>>, vector<4x16xf32>,
    %28 = vector.extract_strided_slice %3 {offsets = [0, 192], sizes = [4, 16], strides = [1, 1]} : vector<4x256xf32> to vector<4x16xf32>
    %c0_16 = arith.constant 0 : index
    %c235 = arith.constant 235 : index
    %29 = vector.load %arg5[%c0_16, %c235] : memref<4x384xf32, #tpu.memory_space<vmem>>, vector<4x16xf32>
    tpu.vector_store %arg5[%c0_16, %c235], %28 {strides = array<i32>} : memref<4x384xf32, #tpu.memory_space<vmem>>, vector<4x16xf32>,
    %30 = vector.extract_strided_slice %3 {offsets = [0, 208], sizes = [4, 16], strides = [1, 1]} : vector<4x256xf32> to vector<4x16xf32>
    %c0_17 = arith.constant 0 : index
    %c253 = arith.constant 253 : index
    %31 = vector.load %arg5[%c0_17, %c253] : memref<4x384xf32, #tpu.memory_space<vmem>>, vector<4x16xf32>
    tpu.vector_store %arg5[%c0_17, %c253], %30 {strides = array<i32>} : memref<4x384xf32, #tpu.memory_space<vmem>>, vector<4x16xf32>,
    %32 = vector.extract_strided_slice %3 {offsets = [0, 224], sizes = [4, 16], strides = [1, 1]} : vector<4x256xf32> to vector<4x16xf32>
    %c0_18 = arith.constant 0 : index
    %c271 = arith.constant 271 : index
    %33 = vector.load %arg5[%c0_18, %c271] : memref<4x384xf32, #tpu.memory_space<vmem>>, vector<4x16xf32>
    tpu.vector_store %arg5[%c0_18, %c271], %32 {strides = array<i32>} : memref<4x384xf32, #tpu.memory_space<vmem>>, vector<4x16xf32>,
    %34 = vector.extract_strided_slice %3 {offsets = [0, 240], sizes = [4, 16], strides = [1, 1]} : vector<4x256xf32> to vector<4x16xf32>
    %c0_19 = arith.constant 0 : index
    %c289 = arith.constant 289 : index
    %35 = vector.load %arg5[%c0_19, %c289] : memref<4x384xf32, #tpu.memory_space<vmem>>, vector<4x16xf32>
    tpu.vector_store %arg5[%c0_19, %c289], %34 {strides = array<i32>} : memref<4x384xf32, #tpu.memory_space<vmem>>, vector<4x16xf32>,
    %c0_20 = arith.constant 0 : index
    %c0_21 = arith.constant 0 : index
    %36 = vector.load %arg5[%c0_20, %c0_21] : memref<4x384xf32, #tpu.memory_space<vmem>>, vector<4x384xf32>
    %c0_22 = arith.constant 0 : index
    %c0_23 = arith.constant 0 : index
    %37 = vector.load %arg6[%c0_22, %c0_23] : memref<36x384xf32, #tpu.memory_space<vmem>>, vector<4x384xf32>
    tpu.vector_store %arg6[%c0_22, %c0_23], %36 {strides = array<i32>} : memref<36x384xf32, #tpu.memory_space<vmem>>, vector<4x384xf32>,
    %c383_i32 = arith.constant 383 : i32
    %38 = tpu.dynamic_rotate %36 by %c383_i32 dim 1 : vector<4x384xf32>, i32 -> vector<4x384xf32>
    %c4 = arith.constant 4 : index
    %c0_24 = arith.constant 0 : index
    %39 = vector.load %arg6[%c4, %c0_24] : memref<36x384xf32, #tpu.memory_space<vmem>>, vector<4x384xf32>
    tpu.vector_store %arg6[%c4, %c0_24], %38 {strides = array<i32>} : memref<36x384xf32, #tpu.memory_space<vmem>>, vector<4x384xf32>,
    %c382_i32 = arith.constant 382 : i32
    %40 = tpu.dynamic_rotate %36 by %c382_i32 dim 1 : vector<4x384xf32>, i32 -> vector<4x384xf32>
    %c8 = arith.constant 8 : index
    %c0_25 = arith.constant 0 : index
    %41 = vector.load %arg6[%c8, %c0_25] : memref<36x384xf32, #tpu.memory_space<vmem>>, vector<4x384xf32>
    tpu.vector_store %arg6[%c8, %c0_25], %40 {strides = array<i32>} : memref<36x384xf32, #tpu.memory_space<vmem>>, vector<4x384xf32>,
    %c366_i32 = arith.constant 366 : i32
    %42 = tpu.dynamic_rotate %36 by %c366_i32 dim 1 : vector<4x384xf32>, i32 -> vector<4x384xf32>
    %c12 = arith.constant 12 : index
    %c0_26 = arith.constant 0 : index
    %43 = vector.load %arg6[%c12, %c0_26] : memref<36x384xf32, #tpu.memory_space<vmem>>, vector<4x384xf32>
    tpu.vector_store %arg6[%c12, %c0_26], %42 {strides = array<i32>} : memref<36x384xf32, #tpu.memory_space<vmem>>, vector<4x384xf32>,
    %c365_i32 = arith.constant 365 : i32
    %44 = tpu.dynamic_rotate %36 by %c365_i32 dim 1 : vector<4x384xf32>, i32 -> vector<4x384xf32>
    %c16 = arith.constant 16 : index
    %c0_27 = arith.constant 0 : index
    %45 = vector.load %arg6[%c16, %c0_27] : memref<36x384xf32, #tpu.memory_space<vmem>>, vector<4x384xf32>
    tpu.vector_store %arg6[%c16, %c0_27], %44 {strides = array<i32>} : memref<36x384xf32, #tpu.memory_space<vmem>>, vector<4x384xf32>,
    %c364_i32 = arith.constant 364 : i32
    %46 = tpu.dynamic_rotate %36 by %c364_i32 dim 1 : vector<4x384xf32>, i32 -> vector<4x384xf32>
    %c20 = arith.constant 20 : index
    %c0_28 = arith.constant 0 : index
    %47 = vector.load %arg6[%c20, %c0_28] : memref<36x384xf32, #tpu.memory_space<vmem>>, vector<4x384xf32>
    tpu.vector_store %arg6[%c20, %c0_28], %46 {strides = array<i32>} : memref<36x384xf32, #tpu.memory_space<vmem>>, vector<4x384xf32>,
    %c348_i32 = arith.constant 348 : i32
    %48 = tpu.dynamic_rotate %36 by %c348_i32 dim 1 : vector<4x384xf32>, i32 -> vector<4x384xf32>
    %c24 = arith.constant 24 : index
    %c0_29 = arith.constant 0 : index
    %49 = vector.load %arg6[%c24, %c0_29] : memref<36x384xf32, #tpu.memory_space<vmem>>, vector<4x384xf32>
    tpu.vector_store %arg6[%c24, %c0_29], %48 {strides = array<i32>} : memref<36x384xf32, #tpu.memory_space<vmem>>, vector<4x384xf32>,
    %c347_i32 = arith.constant 347 : i32
    %50 = tpu.dynamic_rotate %36 by %c347_i32 dim 1 : vector<4x384xf32>, i32 -> vector<4x384xf32>
    %c28 = arith.constant 28 : index
    %c0_30 = arith.constant 0 : index
    %51 = vector.load %arg6[%c28, %c0_30] : memref<36x384xf32, #tpu.memory_space<vmem>>, vector<4x384xf32>
    tpu.vector_store %arg6[%c28, %c0_30], %50 {strides = array<i32>} : memref<36x384xf32, #tpu.memory_space<vmem>>, vector<4x384xf32>,
    %c346_i32 = arith.constant 346 : i32
    %52 = tpu.dynamic_rotate %36 by %c346_i32 dim 1 : vector<4x384xf32>, i32 -> vector<4x384xf32>
    %c32 = arith.constant 32 : index
    %c0_31 = arith.constant 0 : index
    %53 = vector.load %arg6[%c32, %c0_31] : memref<36x384xf32, #tpu.memory_space<vmem>>, vector<4x384xf32>
    tpu.vector_store %arg6[%c32, %c0_31], %52 {strides = array<i32>} : memref<36x384xf32, #tpu.memory_space<vmem>>, vector<4x384xf32>,
    %c0_32 = arith.constant 0 : index
    %c0_33 = arith.constant 0 : index
    %54 = vector.load %arg2[%c0_32, %c0_33] : memref<4x36xf32, #tpu.memory_space<vmem>>, vector<4x36xf32>
    %c0_34 = arith.constant 0 : index
    %c0_35 = arith.constant 0 : index
    %55 = vector.load %arg6[%c0_34, %c0_35] : memref<36x384xf32, #tpu.memory_space<vmem>>, vector<36x384xf32>
    %cst_36 = arith.constant dense<0.000000e+00> : vector<4x384xf32>
    %56 = tpu.matmul %54, %55, %cst_36 {dimension_numbers = #tpu.dot_dimension_numbers<[1], [0], [0], [1], [0, 0, 1, 1], [], []>} : vector<4x36xf32>, vector<36x384xf32>, vector<4x384xf32> -> vector<4x384xf32>
    %c0_37 = arith.constant 0 : index
    %c0_38 = arith.constant 0 : index
    %57 = vector.load %arg3[%c0_37, %c0_38] : memref<4x1xf32, #tpu.memory_space<vmem>>, vector<4x1xf32>
    %58 = vector.broadcast %57 : vector<4x1xf32> to vector<4x384xf32>
    %59 = arith.addf %56, %58 : vector<4x384xf32>
    %c0_39 = arith.constant 0 : index
    %c0_40 = arith.constant 0 : index
    %c0_41 = arith.constant 0 : index
    %60 = vector.load %arg4[%c0_39, %c0_40, %c0_41] : memref<1x4x384xf32, #tpu.memory_space<vmem>>, vector<1x4x384xf32>
    %61 = vector.shape_cast %60 : vector<1x4x384xf32> to vector<4x384xf32>
    %62 = vector.shape_cast %59 : vector<4x384xf32> to vector<1x4x384xf32>
    tpu.vector_store %arg4[%c0_39, %c0_40, %c0_41], %62 {strides = array<i32>} : memref<1x4x384xf32, #tpu.memory_space<vmem>>, vector<1x4x384xf32>,
    return
  }
  func.func @transform_0(%arg0: i32) -> (i32, i32, i32) {
    %c0_i32 = arith.constant 0 : i32
    %c0_i32_0 = arith.constant 0 : i32
    %c0_i32_1 = arith.constant 0 : i32
    return %arg0, %c0_i32, %c0_i32_0 : i32, i32, i32
  }
  func.func @transform_1(%arg0: i32) -> (i32, i32) {
    %c0_i32 = arith.constant 0 : i32
    %c0_i32_0 = arith.constant 0 : i32
    %c0_i32_1 = arith.constant 0 : i32
    return %c0_i32, %c0_i32_0 : i32, i32
  }
  func.func @transform_2(%arg0: i32) -> (i32, i32) {
    %c0_i32 = arith.constant 0 : i32
    %c0_i32_0 = arith.constant 0 : i32
    %c0_i32_1 = arith.constant 0 : i32
    return %c0_i32, %c0_i32_0 : i32, i32
  }
  func.func @transform_3(%arg0: i32) -> (i32, i32, i32) {
    %c0_i32 = arith.constant 0 : i32
    %c0_i32_0 = arith.constant 0 : i32
    %c0_i32_1 = arith.constant 0 : i32
    return %arg0, %c0_i32, %c0_i32_0 : i32, i32, i32
  }
}

</mosaic_0001>

<llo_original>
// kernel: tpu_custom_call.1
$region0: #{tpu_custom_call.1}
  #allocation0 [shape = 'u32[]', space=smem, size = 0x4, offset = 0x4, fixed_abs, tag = 'smem constant byte address 0x4 - core index']
  #allocation1 [shape = 'u32[72,128]{1,0:T(1,128)}', space=vmem, size = 0x9000, scoped, tag = 'internal scratch']
  #allocation2 [shape = 'f32[4,384]{1,0:T(4,128)}', space=vmem, size = 0x1800, scoped, tag = 'scratch operand']
  #allocation3 [shape = 'f32[36,384]{1,0:T(8,128)}', space=vmem, size = 0xf000, scoped, tag = 'scratch operand']
  %s0 = inlined_call_operand.hbm [shape: f32[2,4,256], index: 0, kind: input, shape index: {}]
  %s1 = inlined_call_operand.vmem [shape: f32[4,36], index: 1, kind: input, shape index: {}]
  %s2 = inlined_call_operand.vmem [shape: f32[4,1], index: 2, kind: input, shape index: {}]
  %s3 = inlined_call_operand.hbm [shape: f32[2,4,384], index: 3, kind: output, shape index: {}]
  %s4 = sld [smem:[#allocation0]]
  $region49: #{tpu_custom_call.1} parent=0
    _
  %s6 = ssub.s32 1, %s4
  %s7 = scalar_select 0, %s6, %s4
  $region1: #{tpu_custom_call.1} parent=0
    #allocation4 [shape = 'u8[8192]{0}', space=vmem, size = 0x2000, scoped, tag = 'input window, operand 0']
    #allocation5 [shape = 's32[2]{0}', space=sflag, size = 0x8, scoped, tag = 'scoped memory for tpu_custom_call.1']
    #allocation6 [shape = 's32[2]{0}', space=sflag, size = 0x8, scoped, tag = 'scoped memory for tpu_custom_call.1']
    #allocation7 [shape = 'u8[12288]{0}', space=vmem, size = 0x3000, scoped, tag = 'output window, operand 0']
    %8 = vsyncpa [#allocation5], 0
    %s9 = scalar_lea.sflag [#allocation5], 1
    %10 = vsyncpa %s9, 0
    %11 = vsyncpa [#allocation6], 0
    %s12 = scalar_lea.sflag [#allocation6], 1
    %13 = vsyncpa %s12, 0
    loop: start=0, step=1, limit=4
    $region2: #{tpu_custom_call.1} parent=1 // loop_pre_header
      _
    $region3: #{tpu_custom_call.1} parent=1 // loop_header
      %s15 = sphi 0, %s19
      %p16 = scmp.ge.s32.totalorder %s15, 4
      %s25 = sphi 0, %s27
      %s28 = sphi 0, %s25
      %s29 = sphi 0, %s28
      %s45 = sphi 0, %s29
      %s49 = sphi 0, %s49
      %s51 = sphi 0, %s49
      %s52 = sphi 0, %s51
      %s66 = sphi 0, %s52
      %s70 = sphi 0, %s70
      %s72 = sphi 0, %s70
      %s73 = sphi 0, %s72
      %s87 = sphi 0, %s73
      %s93 = sphi 0, %s95
      %s96 = sphi 0, %s93
      %s97 = sphi 0, %s96
      %s113 = sphi 0, %s97
    $region4: #{tpu_custom_call.1} parent=1 // loop_header_branch
      %18 = sbr.rel (%p16) target = $region8
    $region5: #{tpu_custom_call.1} parent=1 // loop_body
      %s20 = ssub.s32 %s15, 1
      %s21 = ssub.s32 %s15, 2
      %s22 = sadd.s32 %s15, 1
      %s23 = ssub.s32 %s15, %s22
      %p24 = scmp.eq.s32.totalorder %s23, 0
      %s26 = sadd.s32 %s25, 1
      %s27 = scalar_select %p24, %s25, %s26
      %p30 = pneg %p24
      %p31 = scmp.eq.s32.totalorder %s15, 1
      %p32 = por %p30, %p31
      %p33 = scmp.ne.s32.totalorder %s25, %s28
      %p34 = scmp.eq.s32.totalorder %s15, 0
      %p35 = por %p33, %p34
      %p36 = scmp.ne.s32.totalorder %s25, %s28
      %p37 = scmp.eq.s32.totalorder %s20, 1
      %p38 = por %p36, %p37
      %p39 = scmp.ne.s32.totalorder %s28, %s29
      %p40 = scmp.eq.s32.totalorder %s20, 0
      %p41 = por %p39, %p40
      %p42 = scmp.ne.s32.totalorder %s28, %s29
      %p43 = scmp.eq.s32.totalorder %s21, 1
      %p44 = por %p42, %p43
      %p46 = scmp.ne.s32.totalorder %s29, %s45
      %p47 = scmp.eq.s32.totalorder %s21, 0
      %p48 = por %p46, %p47
      %s50 = sadd.s32 %s49, 1
      %p53 = scmp.eq.s32.totalorder %s15, 1
      %p54 = scmp.ne.s32.totalorder %s49, %s51
      %p55 = scmp.eq.s32.totalorder %s15, 0
      %p56 = por %p54, %p55
      %p57 = scmp.ne.s32.totalorder %s49, %s51
      %p58 = scmp.eq.s32.totalorder %s20, 1
      %p59 = por %p57, %p58
      %p60 = scmp.ne.s32.totalorder %s51, %s52
      %p61 = scmp.eq.s32.totalorder %s20, 0
      %p62 = por %p60, %p61
      %p63 = scmp.ne.s32.totalorder %s51, %s52
      %p64 = scmp.eq.s32.totalorder %s21, 1
      %p65 = por %p63, %p64
      %p67 = scmp.ne.s32.totalorder %s52, %s66
      %p68 = scmp.eq.s32.totalorder %s21, 0
      %p69 = por %p67, %p68
      %s71 = sadd.s32 %s70, 1
      %p74 = scmp.eq.s32.totalorder %s15, 1
      %p75 = scmp.ne.s32.totalorder %s70, %s72
      %p76 = scmp.eq.s32.totalorder %s15, 0
      %p77 = por %p75, %p76
      %p78 = scmp.ne.s32.totalorder %s70, %s72
      %p79 = scmp.eq.s32.totalorder %s20, 1
      %p80 = por %p78, %p79
      %p81 = scmp.ne.s32.totalorder %s72, %s73
      %p82 = scmp.eq.s32.totalorder %s20, 0
      %p83 = por %p81, %p82
      %p84 = scmp.ne.s32.totalorder %s72, %s73
      %p85 = scmp.eq.s32.totalorder %s21, 1
      %p86 = por %p84, %p85
      %p88 = scmp.ne.s32.totalorder %s73, %s87
      %p89 = scmp.eq.s32.totalorder %s21, 0
      %p90 = por %p88, %p89
      %s91 = ssub.s32 %s15, %s22
      %p92 = scmp.eq.s32.totalorder %s91, 0
      %s94 = sadd.s32 %s93, 1
      %s95 = scalar_select %p92, %s93, %s94
      %p98 = pneg %p92
      %p99 = scmp.eq.s32.totalorder %s15, 1
      %p100 = por %p98, %p99
      %p101 = scmp.ne.s32.totalorder %s93, %s96
      %p102 = scmp.eq.s32.totalorder %s15, 0
      %p103 = por %p101, %p102
      %p104 = scmp.ne.s32.totalorder %s93, %s96
      %p105 = scmp.eq.s32.totalorder %s20, 1
      %p106 = por %p104, %p105
      %p107 = scmp.ne.s32.totalorder %s96, %s97
      %p108 = scmp.eq.s32.totalorder %s20, 0
      %p109 = por %p107, %p108
      %p110 = scmp.ne.s32.totalorder %s96, %s97
      %p111 = scmp.eq.s32.totalorder %s21, 1
      %p112 = por %p110, %p111
      %p114 = scmp.ne.s32.totalorder %s97, %s113
      %p115 = scmp.eq.s32.totalorder %s21, 0
      %p116 = por %p114, %p115
      %p117 = scmp.le.s32.totalorder 1, %s15
      %p118 = scmp.lt.s32.totalorder %s15, 3
      %p119 = pnand %p117, %p118
      %p120 = pneg %p119
      // Predicated region
      $region9: #{tpu_custom_call.1} parent=5 // pred_check
        _
      $region10: #{tpu_custom_call.1} parent=5 // pred_check_branch
        %122 = sbr.rel (%p119) target = $region12
      $region11: #{tpu_custom_call.1} parent=5 // pred_region
        %s123 = ssub.s32 %s15, 1
        // Predicated region
        $region13: #{tpu_custom_call.1} parent=11 // pred_check
          %p124 = pneg %p62
        $region14: #{tpu_custom_call.1} parent=11 // pred_check_branch
          %126 = sbr.rel (%p124) target = $region16
        $region15: #{tpu_custom_call.1} parent=11 // pred_region
          _
        $region16: #{tpu_custom_call.1} parent=11 // pred_fallthru
          _
        // Predicated region
        $region17: #{tpu_custom_call.1} parent=11 // pred_check
          %p127 = pneg %p83
        $region18: #{tpu_custom_call.1} parent=11 // pred_check_branch
          %129 = sbr.rel (%p127) target = $region20
        $region19: #{tpu_custom_call.1} parent=11 // pred_region
          _
        $region20: #{tpu_custom_call.1} parent=11 // pred_fallthru
          _
      $region12: #{tpu_custom_call.1} parent=5 // pred_fallthru
        _
      %p130 = scmp.lt.s32.totalorder %s15, 2
      // Predicated region
      $region21: #{tpu_custom_call.1} parent=5 // pred_check
        %p131 = pneg %p130
      $region22: #{tpu_custom_call.1} parent=5 // pred_check_branch
        %133 = sbr.rel (%p131) target = $region24
      $region23: #{tpu_custom_call.1} parent=5 // pred_region
        // Predicated region
        $region25: #{tpu_custom_call.1} parent=23 // pred_check
          %p134 = pneg %p35
        $region26: #{tpu_custom_call.1} parent=23 // pred_check_branch
          %136 = sbr.rel (%p134) target = $region28
        $region27: #{tpu_custom_call.1} parent=23 // pred_region
          %s137 = sand.u32 %s25, 1
          %s138 = scalar_lea.sflag [#allocation5], %s137
          %s139 = sand.u32 %s25, 1
          %s140 = smul.addr %s139, 8
          %s141 = scalar_lea.vmem [#allocation4], %s140
          %143 = vsyncadd %s138, 0
          %s144 = smul.addr %s15, 2
          %s145 = smul.addr %s144, 4
          %s146 = scalar_lea.hbm %s0, %s145
          %s148 = sshll.u32 %s146, 4
          %s149 = int_to_ptr.hbm [resolvable:$true] %s148
          %s150 = sshll.u32 %s141, 4
          %s151 = int_to_ptr.vmem [resolvable:$true] %s150
          %153 = dma.hbm_to_vmem [thread:$0]  %s149, 128, %s151, %s138
        $region28: #{tpu_custom_call.1} parent=23 // pred_fallthru
          _
      $region24: #{tpu_custom_call.1} parent=5 // pred_fallthru
        _
      %p154 = scmp.le.s32.totalorder 1, %s15
      %p155 = scmp.lt.s32.totalorder %s15, 3
      %p156 = pnand %p154, %p155
      %p157 = pneg %p156
      // Predicated region
      $region29: #{tpu_custom_call.1} parent=5 // pred_check
        _
      $region30: #{tpu_custom_call.1} parent=5 // pred_check_branch
        %159 = sbr.rel (%p156) target = $region32
      $region31: #{tpu_custom_call.1} parent=5 // pred_region
        %s160 = ssub.s32 %s15, 1
        %s161 = sand.u32 %s28, 1
        %s162 = scalar_lea.sflag [#allocation5], %s161
        %s163 = sand.u32 %s28, 1
        %s164 = smul.addr %s163, 8
        %s165 = scalar_lea.vmem [#allocation4], %s164
        // Predicated region
        $region33: #{tpu_custom_call.1} parent=31 // pred_check
          %p166 = pneg %p41
        $region34: #{tpu_custom_call.1} parent=31 // pred_check_branch
          %168 = sbr.rel (%p166) target = $region36
        $region35: #{tpu_custom_call.1} parent=31 // pred_region
          %170 = dma.done %s162, 128
        $region36: #{tpu_custom_call.1} parent=31 // pred_fallthru
          _
        %s171 = sand.u32 %s28, 1
        %s172 = scalar_lea.sflag [#allocation5], %s171
        %s173 = sand.u32 %s28, 1
        %s174 = smul.addr %s173, 8
        %s175 = scalar_lea.vmem [#allocation4], %s174
        %p176 = pneg %p41
        %p177 = pneg %p38
        %p178 = pneg %p62
        %p179 = pneg %p59
        %p180 = pneg %p83
        %p181 = pneg %p80
        %p182 = pneg %p109
        %p183 = pneg %p106
        %s184 = sand.u32 %s96, 1
        %s185 = scalar_lea.sflag [#allocation6], %s184
        %s186 = sand.u32 %s96, 1
        %s187 = smul.addr %s186, 12
        %s188 = scalar_lea.vmem [#allocation7], %s187
        %189 = vst [vmem:[#allocation2] sm:$0xff] 0.0
        %190 = vst [vmem:[#allocation2 + $0x8] sm:$0xf] 0.0
        %v191 = vld [vmem:[%s165] sm:$0xff]
        %193 = vrot.lane.b32.xlu0 %v191, 19
        %v194 = vpop.permute.xlu0 %193
        %vm196 = vcmask 281752
        %197 = vst.msk [vmem:[#allocation2] sm:$0xf] %vm196, %v194
        %198 = vrot.lane.b32.xlu0 %v191, 21
        %v199 = vpop.permute.xlu0 %198
        %vm201 = vcmask 429352
        %202 = vst.msk [vmem:[#allocation2] sm:$0xf] %vm201, %v199
        %203 = vrot.lane.b32.xlu0 %v191, 23
        %v204 = vpop.permute.xlu0 %203
        %vm206 = vcmask 576952
        %207 = vst.msk [vmem:[#allocation2] sm:$0xf] %vm206, %v204
        %208 = vrot.lane.b32.xlu0 %v191, 25
        %v209 = vpop.permute.xlu0 %208
        %vm211 = vcmask 724552
        %212 = vst.msk [vmem:[#allocation2] sm:$0xf] %vm211, %v209
        %213 = vrot.lane.b32.xlu0 %v191, 27
        %v214 = vpop.permute.xlu0 %213
        %vm216 = vcmask 872152
        %217 = vst.msk [vmem:[#allocation2] sm:$0xf] %vm216, %v214
        %218 = vrot.lane.b32.xlu0 %v191, 29
        %v219 = vpop.permute.xlu0 %218
        %vm221 = vcmask 1019752
        %222 = vst.msk [vmem:[#allocation2] sm:$0xf] %vm221, %v219
        %223 = vrot.lane.b32.xlu0 %v191, 31
        %v224 = vpop.permute.xlu0 %223
        %v225 = vrot.slane %v224, 4
        %vm226 = vcmask 252928
        %v227 = vsel %vm226, %v225, %v224
        %vm229 = vcmask 1044472
        %vm230 = vcmask 121860
        %vm231 = vmor %vm230, %vm229
        %232 = vst.msk [vmem:[#allocation2] sm:$0xff] %vm231, %v227
        %233 = vrot.lane.b32.xlu0 %v191, 33
        %v234 = vpop.permute.xlu0 %233
        %vm236 = vcmask 265352
        %237 = vst.msk [vmem:[#allocation2 + $0x4] sm:$0xf] %vm236, %v234
        %238 = vrot.lane.b32.xlu0 %v191, 35
        %v239 = vpop.permute.xlu0 %238
        %v240 = vrot.slane %v239, 4
        %vm241 = vcmask 285696
        %v242 = vsel %vm241, %v239, %v240
        %vm244 = vcmask 412952
        %245 = vst.msk [vmem:[#allocation2 + $0x4] sm:$0xf] %vm244, %v242
        %246 = vrot.lane.b32.xlu0 %v191, 37
        %v247 = vpop.permute.xlu0 %246
        %v248 = vrot.slane %v247, 4
        %vm249 = vcmask 302080
        %v250 = vsel %vm249, %v247, %v248
        %vm252 = vcmask 560552
        %253 = vst.msk [vmem:[#allocation2 + $0x4] sm:$0xf] %vm252, %v250
        %254 = vrot.lane.b32.xlu0 %v191, 39
        %v255 = vpop.permute.xlu0 %254
        %v256 = vrot.slane %v255, 4
        %vm257 = vcmask 318464
        %v258 = vsel %vm257, %v255, %v256
        %vm260 = vcmask 708152
        %261 = vst.msk [vmem:[#allocation2 + $0x4] sm:$0xf] %vm260, %v258
        %262 = vrot.lane.b32.xlu0 %v191, 41
        %v263 = vpop.permute.xlu0 %262
        %v264 = vrot.slane %v263, 4
        %vm265 = vcmask 334848
        %v266 = vsel %vm265, %v263, %v264
        %vm268 = vcmask 855752
        %269 = vst.msk [vmem:[#allocation2 + $0x4] sm:$0xf] %vm268, %v266
        %270 = vrot.lane.b32.xlu0 %v191, 43
        %v271 = vpop.permute.xlu0 %270
        %v272 = vrot.slane %v271, 4
        %vm273 = vcmask 351232
        %v274 = vsel %vm273, %v271, %v272
        %vm276 = vcmask 1003352
        %277 = vst.msk [vmem:[#allocation2 + $0x4] sm:$0xf] %vm276, %v274
        %278 = vrot.lane.b32.xlu0 %v191, 45
        %v279 = vpop.permute.xlu0 %278
        %v280 = vrot.slane %v279, 4
        %vm281 = vcmask 367616
        %v282 = vsel %vm281, %v279, %v280
        %vm284 = vcmask 1044456
        %vm285 = vcmask 105476
        %vm286 = vmor %vm285, %vm284
        %287 = vst.msk [vmem:[#allocation2 + $0x4] sm:$0xff] %vm286, %v282
        %288 = vrot.lane.b32.xlu0 %v191, 47
        %v289 = vpop.permute.xlu0 %288
        %v290 = vrot.slane %v289, 4
        %vm292 = vcmask 248952
        %293 = vst.msk [vmem:[#allocation2 + $0x8] sm:$0xf] %vm292, %v290
        %294 = vrot.lane.b32.xlu0 %v191, 49
        %v295 = vpop.permute.xlu0 %294
        %v296 = vrot.slane %v295, 4
        %vm298 = vcmask 396552
        %299 = vst.msk [vmem:[#allocation2 + $0x8] sm:$0xf] %vm298, %v296
        %v300 = vld [vmem:[#allocation2] sm:$0xff]
        %v301 = vld [vmem:[#allocation2 + $0x8] sm:$0xf]
        %304 = vst [vmem:[#allocation1] ss:$2 sm:$0xff] %v300
        %s305 = scalar_lea.vmem [#allocation1], 16
        %306 = vst [vmem:[%s305] ss:$2 sm:$0xff] %v301
        %v307 = vld.sshfl [vmem:[#allocation1] sm:$0xff pattern:$0x75316420]
        %v308 = vld.sshfl [vmem:[#allocation1 + $0x8] sm:$0xff pattern:$0x75316420]
        %v309 = vld.sshfl [vmem:[#allocation1 + $0x10] sm:$0xff pattern:$0x75316420]
        %313 = vst [vmem:[#allocation3] sm:$0xf] %v307
        %314 = vst [vmem:[#allocation3 + $0x8] sm:$0xf] %v308
        %315 = vst [vmem:[#allocation3 + $0x10] sm:$0xf] %v309
        %316 = vst [vmem:[#allocation1] ss:$2 sm:$0xff] %v300
        %s317 = scalar_lea.vmem [#allocation1], 16
        %318 = vst [vmem:[%s317] ss:$2 sm:$0xff] %v301
        %v319 = vld.sshfl [vmem:[#allocation1] sm:$0xff pattern:$0x75316420]
        %v320 = vld.sshfl [vmem:[#allocation1 + $0x8] sm:$0xff pattern:$0x75316420]
        %v321 = vld.sshfl [vmem:[#allocation1 + $0x10] sm:$0xff pattern:$0x75316420]
        %325 = vrot.lane.b32.xlu0 %v319, 127
        %v326 = vpop.permute.xlu0 %325
        %327 = vrot.lane.b32.xlu0 %v320, 127
        %v328 = vpop.permute.xlu0 %327
        %329 = vrot.lane.b32.xlu0 %v321, 127
        %v330 = vpop.permute.xlu0 %329
        %v331 = vlaneseq
        %v332 = vand.u32 %v331, 127
        %vm333 = vcmp.lt.s32.totalorder %v332, 127
        %v334 = vsel %vm333, %v328, %v330
        %v335 = vsel %vm333, %v326, %v328
        %v336 = vsel %vm333, %v330, %v326
        %v340 = vrot.slane %v335, 4
        %v341 = vrot.slane %v334, 4
        %v342 = vrot.slane %v336, 4
        %346 = vst [vmem:[#allocation3] sm:$0xf0] %v340
        %347 = vst [vmem:[#allocation3 + $0x8] sm:$0xf0] %v341
        %348 = vst [vmem:[#allocation3 + $0x10] sm:$0xf0] %v342
        %349 = vst [vmem:[#allocation1] ss:$2 sm:$0xff] %v300
        %s350 = scalar_lea.vmem [#allocation1], 16
        %351 = vst [vmem:[%s350] ss:$2 sm:$0xff] %v301
        %v352 = vld.sshfl [vmem:[#allocation1] sm:$0xff pattern:$0x75316420]
        %v353 = vld.sshfl [vmem:[#allocation1 + $0x8] sm:$0xff pattern:$0x75316420]
        %v354 = vld.sshfl [vmem:[#allocation1 + $0x10] sm:$0xff pattern:$0x75316420]
        %358 = vrot.lane.b32.xlu0 %v352, 126
        %v359 = vpop.permute.xlu0 %358
        %360 = vrot.lane.b32.xlu0 %v353, 126
        %v361 = vpop.permute.xlu0 %360
        %362 = vrot.lane.b32.xlu0 %v354, 126
        %v363 = vpop.permute.xlu0 %362
        %vm364 = vcmp.lt.s32.totalorder %v332, 126
        %v365 = vsel %vm364, %v361, %v363
        %v366 = vsel %vm364, %v359, %v361
        %v367 = vsel %vm364, %v363, %v359
        %368 = vst [vmem:[#allocation3 + $0x18] sm:$0xf] %v366
        %369 = vst [vmem:[#allocation3 + $0x20] sm:$0xf] %v365
        %370 = vst [vmem:[#allocation3 + $0x28] sm:$0xf] %v367
        %371 = vst [vmem:[#allocation1] ss:$2 sm:$0xff] %v300
        %s372 = scalar_lea.vmem [#allocation1], 16
        %373 = vst [vmem:[%s372] ss:$2 sm:$0xff] %v301
        %v374 = vld.sshfl [vmem:[#allocation1] sm:$0xff pattern:$0x75316420]
        %v375 = vld.sshfl [vmem:[#allocation1 + $0x8] sm:$0xff pattern:$0x75316420]
        %v376 = vld.sshfl [vmem:[#allocation1 + $0x10] sm:$0xff pattern:$0x75316420]
        %380 = vrot.lane.b32.xlu0 %v374, 110
        %v381 = vpop.permute.xlu0 %380
        %382 = vrot.lane.b32.xlu0 %v375, 110
        %v383 = vpop.permute.xlu0 %382
        %384 = vrot.lane.b32.xlu0 %v376, 110
        %v385 = vpop.permute.xlu0 %384
        %vm386 = vcmp.lt.s32.totalorder %v332, 110
        %v387 = vsel %vm386, %v383, %v385
        %v388 = vsel %vm386, %v381, %v383
        %v389 = vsel %vm386, %v385, %v381
        %v393 = vrot.slane %v388, 4
        %v394 = vrot.slane %v387, 4
        %v395 = vrot.slane %v389, 4
        %399 = vst [vmem:[#allocation3 + $0x18] sm:$0xf0] %v393
        %400 = vst [vmem:[#allocation3 + $0x20] sm:$0xf0] %v394
        %401 = vst [vmem:[#allocation3 + $0x28] sm:$0xf0] %v395
        %402 = vst [vmem:[#allocation1] ss:$2 sm:$0xff] %v300
        %s403 = scalar_lea.vmem [#allocation1], 16
        %404 = vst [vmem:[%s403] ss:$2 sm:$0xff] %v301
        %v405 = vld.sshfl [vmem:[#allocation1] sm:$0xff pattern:$0x75316420]
        %v406 = vld.sshfl [vmem:[#allocation1 + $0x8] sm:$0xff pattern:$0x75316420]
        %v407 = vld.sshfl [vmem:[#allocation1 + $0x10] sm:$0xff pattern:$0x75316420]
        %411 = vrot.lane.b32.xlu0 %v405, 109
        %v412 = vpop.permute.xlu0 %411
        %413 = vrot.lane.b32.xlu0 %v406, 109
        %v414 = vpop.permute.xlu0 %413
        %415 = vrot.lane.b32.xlu0 %v407, 109
        %v416 = vpop.permute.xlu0 %415
        %vm417 = vcmp.lt.s32.totalorder %v332, 109
        %v418 = vsel %vm417, %v414, %v416
        %v419 = vsel %vm417, %v412, %v414
        %v420 = vsel %vm417, %v416, %v412
        %421 = vst [vmem:[#allocation3 + $0x30] sm:$0xf] %v419
        %422 = vst [vmem:[#allocation3 + $0x38] sm:$0xf] %v418
        %423 = vst [vmem:[#allocation3 + $0x40] sm:$0xf] %v420
        %424 = vst [vmem:[#allocation1] ss:$2 sm:$0xff] %v300
        %s425 = scalar_lea.vmem [#allocation1], 16
        %426 = vst [vmem:[%s425] ss:$2 sm:$0xff] %v301
        %v427 = vld.sshfl [vmem:[#allocation1] sm:$0xff pattern:$0x75316420]
        %v428 = vld.sshfl [vmem:[#allocation1 + $0x8] sm:$0xff pattern:$0x75316420]
        %v429 = vld.sshfl [vmem:[#allocation1 + $0x10] sm:$0xff pattern:$0x75316420]
        %433 = vrot.lane.b32.xlu0 %v427, 108
        %v434 = vpop.permute.xlu0 %433
        %435 = vrot.lane.b32.xlu0 %v428, 108
        %v436 = vpop.permute.xlu0 %435
        %437 = vrot.lane.b32.xlu0 %v429, 108
        %v438 = vpop.permute.xlu0 %437
        %vm439 = vcmp.lt.s32.totalorder %v332, 108
        %v440 = vsel %vm439, %v436, %v438
        %v441 = vsel %vm439, %v434, %v436
        %v442 = vsel %vm439, %v438, %v434
        %v446 = vrot.slane %v441, 4
        %v447 = vrot.slane %v440, 4
        %v448 = vrot.slane %v442, 4
        %452 = vst [vmem:[#allocation3 + $0x30] sm:$0xf0] %v446
        %453 = vst [vmem:[#allocation3 + $0x38] sm:$0xf0] %v447
        %454 = vst [vmem:[#allocation3 + $0x40] sm:$0xf0] %v448
        %455 = vst [vmem:[#allocation1] ss:$2 sm:$0xff] %v300
        %s456 = scalar_lea.vmem [#allocation1], 16
        %457 = vst [vmem:[%s456] ss:$2 sm:$0xff] %v301
        %v458 = vld.sshfl [vmem:[#allocation1] sm:$0xff pattern:$0x75316420]
        %v459 = vld.sshfl [vmem:[#allocation1 + $0x8] sm:$0xff pattern:$0x75316420]
        %v460 = vld.sshfl [vmem:[#allocation1 + $0x10] sm:$0xff pattern:$0x75316420]
        %464 = vrot.lane.b32.xlu0 %v458, 92
        %v465 = vpop.permute.xlu0 %464
        %466 = vrot.lane.b32.xlu0 %v459, 92
        %v467 = vpop.permute.xlu0 %466
        %468 = vrot.lane.b32.xlu0 %v460, 92
        %v469 = vpop.permute.xlu0 %468
        %vm470 = vcmp.lt.s32.totalorder %v332, 92
        %v471 = vsel %vm470, %v467, %v469
        %v472 = vsel %vm470, %v465, %v467
        %v473 = vsel %vm470, %v469, %v465
        %474 = vst [vmem:[#allocation3 + $0x48] sm:$0xf] %v472
        %475 = vst [vmem:[#allocation3 + $0x50] sm:$0xf] %v471
        %476 = vst [vmem:[#allocation3 + $0x58] sm:$0xf] %v473
        %477 = vst [vmem:[#allocation1] ss:$2 sm:$0xff] %v300
        %s478 = scalar_lea.vmem [#allocation1], 16
        %479 = vst [vmem:[%s478] ss:$2 sm:$0xff] %v301
        %v480 = vld.sshfl [vmem:[#allocation1] sm:$0xff pattern:$0x75316420]
        %v481 = vld.sshfl [vmem:[#allocation1 + $0x8] sm:$0xff pattern:$0x75316420]
        %v482 = vld.sshfl [vmem:[#allocation1 + $0x10] sm:$0xff pattern:$0x75316420]
        %486 = vrot.lane.b32.xlu0 %v480, 91
        %v487 = vpop.permute.xlu0 %486
        %488 = vrot.lane.b32.xlu0 %v481, 91
        %v489 = vpop.permute.xlu0 %488
        %490 = vrot.lane.b32.xlu0 %v482, 91
        %v491 = vpop.permute.xlu0 %490
        %vm492 = vcmp.lt.s32.totalorder %v332, 91
        %v493 = vsel %vm492, %v489, %v491
        %v494 = vsel %vm492, %v487, %v489
        %v495 = vsel %vm492, %v491, %v487
        %v499 = vrot.slane %v494, 4
        %v500 = vrot.slane %v493, 4
        %v501 = vrot.slane %v495, 4
        %505 = vst [vmem:[#allocation3 + $0x48] sm:$0xf0] %v499
        %506 = vst [vmem:[#allocation3 + $0x50] sm:$0xf0] %v500
        %507 = vst [vmem:[#allocation3 + $0x58] sm:$0xf0] %v501
        %508 = vst [vmem:[#allocation1] ss:$2 sm:$0xff] %v300
        %s509 = scalar_lea.vmem [#allocation1], 16
        %510 = vst [vmem:[%s509] ss:$2 sm:$0xff] %v301
        %v511 = vld.sshfl [vmem:[#allocation1] sm:$0xff pattern:$0x75316420]
        %v512 = vld.sshfl [vmem:[#allocation1 + $0x8] sm:$0xff pattern:$0x75316420]
        %v513 = vld.sshfl [vmem:[#allocation1 + $0x10] sm:$0xff pattern:$0x75316420]
        %517 = vrot.lane.b32.xlu0 %v511, 90
        %v518 = vpop.permute.xlu0 %517
        %519 = vrot.lane.b32.xlu0 %v512, 90
        %v520 = vpop.permute.xlu0 %519
        %521 = vrot.lane.b32.xlu0 %v513, 90
        %v522 = vpop.permute.xlu0 %521
        %vm523 = vcmp.lt.s32.totalorder %v332, 90
        %v524 = vsel %vm523, %v520, %v522
        %v525 = vsel %vm523, %v518, %v520
        %v526 = vsel %vm523, %v522, %v518
        %527 = vst [vmem:[#allocation3 + $0x60] sm:$0xf] %v525
        %528 = vst [vmem:[#allocation3 + $0x68] sm:$0xf] %v524
        %529 = vst [vmem:[#allocation3 + $0x70] sm:$0xf] %v526
        %v530 = vld [vmem:[%s1] sm:$0xf]
        %v531 = vld [vmem:[#allocation3] sm:$0xff]
        %v532 = vld [vmem:[#allocation3 + $0x8] sm:$0xff]
        %v533 = vld [vmem:[#allocation3 + $0x10] sm:$0xff]
        %v534 = vld [vmem:[#allocation3 + $0x18] sm:$0xff]
        %v535 = vld [vmem:[#allocation3 + $0x20] sm:$0xff]
        %v536 = vld [vmem:[#allocation3 + $0x28] sm:$0xff]
        %v537 = vld [vmem:[#allocation3 + $0x30] sm:$0xff]
        %v538 = vld [vmem:[#allocation3 + $0x38] sm:$0xff]
        %v539 = vld [vmem:[#allocation3 + $0x40] sm:$0xff]
        %v540 = vld [vmem:[#allocation3 + $0x48] sm:$0xff]
        %v541 = vld [vmem:[#allocation3 + $0x50] sm:$0xff]
        %v542 = vld [vmem:[#allocation3 + $0x58] sm:$0xff]
        %v543 = vld [vmem:[#allocation3 + $0x60] sm:$0xf]
        %v544 = vld [vmem:[#allocation3 + $0x68] sm:$0xf]
        %v545 = vld [vmem:[#allocation3 + $0x70] sm:$0xf]
        %v546 = vld [vmem:[%s2] sm:$0xf]
        %548 = vset.pattern.permute.xlu0 0
        %549 = vperm.xlu0 %548, %v546
        %v550 = vpop.permute.xlu0 %549
        %vm552 = vcmask 293888
        %v554 = vsel %vm552, %v530, 0
        %vm556 = vcmask 1043456
        %v558 = vsel %vm556, %v543, 0
        %v561 = vsel %vm556, %v544, 0
        %v564 = vsel %vm556, %v545, 0
        %566 = vmatpush.msra.mxu0 0.0
        %567 = vmatpush.msra.mxu0 0.0
        %568 = vmatpush.msra.mxu0 0.0
        %569 = vmatpush.msra.mxu0 0.0
        %570 = vmatpush.msra.mxu0 0.0
        %571 = vmatpush.msra.mxu0 0.0
        %572 = vmatpush.msra.mxu0 0.0
        %573 = vmatpush.msra.mxu0 0.0
        %574 = vmatpush.msra.mxu0 0.0
        %575 = vmatpush.msra.mxu0 0.0
        %576 = vmatpush.msra.mxu0 0.0
        %577 = vmatpush.msra.mxu0 %v558
        %578 = vmatpush.msra.mxu0 %v540
        %579 = vmatpush.msra.mxu0 %v537
        %580 = vmatpush.msra.mxu0 %v534
        %581 = vmatpush.msra.mxu0 %v531
        %582 = vmatmul.f32.gmra.mxu0 %v554
        %v583 = vpop.f32.mrf.mxu0
        %v584 = vadd.f32 %v550, %v583
        %585 = vdwg.mxu0
        %586 = vmatpush.msra.mxu0 0.0
        %587 = vmatpush.msra.mxu0 0.0
        %588 = vmatpush.msra.mxu0 0.0
        %589 = vmatpush.msra.mxu0 0.0
        %590 = vmatpush.msra.mxu0 0.0
        %591 = vmatpush.msra.mxu0 0.0
        %592 = vmatpush.msra.mxu0 0.0
        %593 = vmatpush.msra.mxu0 0.0
        %594 = vmatpush.msra.mxu0 0.0
        %595 = vmatpush.msra.mxu0 0.0
        %596 = vmatpush.msra.mxu0 0.0
        %597 = vmatpush.msra.mxu0 %v561
        %598 = vmatpush.msra.mxu0 %v541
        %599 = vmatpush.msra.mxu0 %v538
        %600 = vmatpush.msra.mxu0 %v535
        %601 = vmatpush.msra.mxu0 %v532
        %602 = vmatmul.f32.gmra.mxu0 %v554
        %v603 = vpop.f32.mrf.mxu0
        %v604 = vadd.f32 %v550, %v603
        %605 = vdwg.mxu0
        %606 = vmatpush.msra.mxu0 0.0
        %607 = vmatpush.msra.mxu0 0.0
        %608 = vmatpush.msra.mxu0 0.0
        %609 = vmatpush.msra.mxu0 0.0
        %610 = vmatpush.msra.mxu0 0.0
        %611 = vmatpush.msra.mxu0 0.0
        %612 = vmatpush.msra.mxu0 0.0
        %613 = vmatpush.msra.mxu0 0.0
        %614 = vmatpush.msra.mxu0 0.0
        %615 = vmatpush.msra.mxu0 0.0
        %616 = vmatpush.msra.mxu0 0.0
        %617 = vmatpush.msra.mxu0 %v564
        %618 = vmatpush.msra.mxu0 %v542
        %619 = vmatpush.msra.mxu0 %v539
        %620 = vmatpush.msra.mxu0 %v536
        %621 = vmatpush.msra.mxu0 %v533
        %622 = vmatmul.f32.gmra.mxu0 %v554
        %v623 = vpop.f32.mrf.mxu0
        %v624 = vadd.f32 %v550, %v623
        %625 = vdwg.mxu0
        %v628 = vrot.slane %v604, 4
        %v629 = vsel %vm556, %v584, %v628
        %631 = vst [vmem:[%s188] sm:$0xff] %v629
        %632 = vst [vmem:[%s188 + $0x8] sm:$0xf] %v624
        %s633 = sand.u32 %s96, 1
        %s634 = scalar_lea.sflag [#allocation6], %s633
        %s635 = sand.u32 %s96, 1
        %s636 = smul.addr %s635, 12
        %s637 = scalar_lea.vmem [#allocation7], %s636
        // Predicated region
        $region37: #{tpu_custom_call.1} parent=31 // pred_check
          %p638 = pneg %p106
        $region38: #{tpu_custom_call.1} parent=31 // pred_check_branch
          %640 = sbr.rel (%p638) target = $region40
        $region39: #{tpu_custom_call.1} parent=31 // pred_region
          %642 = vsyncadd %s634, 0
          %s643 = smul.addr %s20, 3
          %s644 = smul.addr %s643, 4
          %s645 = scalar_lea.hbm %s3, %s644
          %s647 = sshll.u32 %s637, 4
          %s648 = int_to_ptr.vmem [resolvable:$true] %s647
          %s649 = sshll.u32 %s645, 4
          %s650 = int_to_ptr.hbm [resolvable:$true] %s649
          %652 = dma.vmem_to_hbm [thread:$0]  %s648, 192, %s650, %s634
        $region40: #{tpu_custom_call.1} parent=31 // pred_fallthru
          _
      $region32: #{tpu_custom_call.1} parent=5 // pred_fallthru
        _
      %p653 = scmp.le.s32.totalorder 2, %s15
      // Predicated region
      $region41: #{tpu_custom_call.1} parent=5 // pred_check
        %p654 = pneg %p653
      $region42: #{tpu_custom_call.1} parent=5 // pred_check_branch
        %656 = sbr.rel (%p654) target = $region44
      $region43: #{tpu_custom_call.1} parent=5 // pred_region
        %s657 = ssub.s32 %s15, 2
        // Predicated region
        $region45: #{tpu_custom_call.1} parent=43 // pred_check
          %p658 = pneg %p112
        $region46: #{tpu_custom_call.1} parent=43 // pred_check_branch
          %660 = sbr.rel (%p658) target = $region48
        $region47: #{tpu_custom_call.1} parent=43 // pred_region
          %s661 = sand.u32 %s97, 1
          %s662 = scalar_lea.sflag [#allocation6], %s661
          %s663 = sand.u32 %s97, 1
          %s664 = smul.addr %s663, 12
          %s665 = scalar_lea.vmem [#allocation7], %s664
          %667 = dma.done %s662, 192
        $region48: #{tpu_custom_call.1} parent=43 // pred_fallthru
          _
      $region44: #{tpu_custom_call.1} parent=5 // pred_fallthru
        _
    $region6: #{tpu_custom_call.1} parent=1 // loop_footer
      %s19 = sadd.s32 1, %s15
    $region7: #{tpu_custom_call.1} parent=1 // loop_footer_branch
      %14 = sbr.rel target = $region3
    $region8: #{tpu_custom_call.1} parent=1 // loop_exit
      _
    %668 = vsyncpa [#allocation5], 1
    %s669 = scalar_lea.sflag [#allocation5], 1
    %670 = vsyncpa %s669, 1
    %671 = vsyncpa [#allocation6], 1
    %s672 = scalar_lea.sflag [#allocation6], 1
    %673 = vsyncpa %s672, 1

</llo_original>
